<compile_context>
chip_gen: v7x
topology: tpu7x:2x2x1
jax: 0.10.0
libtpu: 0.0.40
codegen_flags: <defaults>
</compile_context>

<pallas_src>
import functools

import jax
import jax.numpy as jnp
from jax.experimental import pallas as pl
from jax.experimental.pallas import tpu as pltpu

LANE = 128
MAX_TILE_ROWS = 8192               # (8192, 128) f32 tile = 4 MiB per input buffer
VMEM_LIMIT_BYTES = 32 * 1024 * 1024  # headroom for 2 inputs x 2 buffers + scratch


def _round_up(a, b):
    return (a + b - 1) // b * b


def _sublane_multiple(dtype):
    # Native packed sublane multiple: 8 (32-bit), 16 (16-bit), 32 (8-bit).
    return max(8, 256 // (jnp.dtype(dtype).itemsize * 8))


def _num_tensorcores():
    # v7x has 2 TensorCores per chip; v5e / v6e have 1. Default 1 is always safe.
    try:
        kind = jax.devices()[0].device_kind.lower()
    except Exception:
        return 1
    return 2 if ("v7" in kind or "7x" in kind) else 1


def _dice_partial_kernel(x_ref, t_ref, out_ref, acc_num, acc_den, *,
                         valid_rows, total_blocks, has_tail, has_dup):
    p = pl.program_id(0)
    j = pl.program_id(1)
    steps = pl.num_programs(1)
    tile_rows = x_ref.shape[0]
    block_idx = p * steps + j  # unclamped (intended) block index

    @pl.when(j == 0)
    def _():
        acc_num[...] = jnp.zeros_like(acc_num)
        acc_den[...] = jnp.zeros_like(acc_den)

    def accumulate(masked):
        x = x_ref[...].astype(jnp.float32)
        t = t_ref[...].astype(jnp.float32)
        # TODO(synk): on v7x, if the bundle dump shows a VALU divide here,
        # switch to pl.reciprocal(1.0 + jnp.exp(-x), approx=True) (EUP slot).
        s = jax.nn.sigmoid(x)
        if masked:
            # valid_rows is an exact row count (the <128-element remainder is
            # folded in by the wrapper), so a row-only mask suffices. Stale /
            # garbage rows are masked to exactly 0 before accumulation.
            rid = jax.lax.broadcasted_iota(jnp.int32, (tile_rows, LANE), 0)
            ok = (rid + block_idx * tile_rows) < valid_rows
            s = jnp.where(ok, s, 0.0)
            t = jnp.where(ok, t, 0.0)
        # Vreg-sized accumulators: sublane-aligned reshape + leading-axis sum
        # is pure VALU work (no XLU, no tile-sized VMEM accumulator traffic).
        num = (s * t).reshape(tile_rows // 8, 8, LANE)
        den = (s + t).reshape(tile_rows // 8, 8, LANE)
        acc_num[...] += jnp.sum(num, axis=0)
        acc_den[...] += jnp.sum(den, axis=0)

    if not (has_tail or has_dup):
        # Fast path everywhere: every block is full and in-bounds.
        accumulate(masked=False)
    else:
        last_real = total_blocks - 1
        interior_limit = last_real if has_tail else total_blocks

        @pl.when(block_idx < interior_limit)
        def _():
            accumulate(masked=False)       # interior blocks: no mask

        if has_tail:
            @pl.when(block_idx == last_real)
            def _():
                accumulate(masked=True)    # true tail block: masked
        # block_idx >= total_blocks (duplicated clamped block): skip compute.

    @pl.when(j == steps - 1)
    def _():
        inter = jnp.sum(acc_num[...])
        denom = jnp.sum(acc_den[...])
        rid = jax.lax.broadcasted_iota(jnp.int32, (1, 8, LANE), 1)
        out_ref[...] = jnp.where(rid == 0, inter,
                                 jnp.where(rid == 1, denom, 0.0))


def dice_loss(inputs, targets, smooth=1.0):
    """Pallas TPU implementation of DiceLoss.forward (returns a scalar)."""
    x = inputs.reshape(-1)
    t = targets.reshape(-1)
    n = x.shape[0]
    n_main = (n // LANE) * LANE

    # Fold the non-128-aligned remainder (<128 elements) in with plain JAX so
    # the kernel never needs a padded HBM copy of the inputs.
    tail_inter = jnp.float32(0.0)
    tail_denom = jnp.float32(0.0)
    if n_main < n:
        xs = jax.nn.sigmoid(x[n_main:].astype(jnp.float32))
        ts = t[n_main:].astype(jnp.float32)
        tail_inter = jnp.sum(xs * ts)
        tail_denom = jnp.sum(xs) + jnp.sum(ts)

    if n_main == 0:
        inter, denom = tail_inter, tail_denom
    else:
        rows = n_main // LANE
        xk = x if n_main == n else x[:n_main]
        tk = t if n_main == n else t[:n_main]
        x2 = xk.reshape(rows, LANE)
        t2 = tk.reshape(rows, LANE)

        # Keep inputs in native dtype; tile rows rounded to the packed
        # sublane multiple (8 f32 / 16 bf16 / 32 int8).
        sub = max(_sublane_multiple(x2.dtype), _sublane_multiple(t2.dtype))
        tile_rows = min(MAX_TILE_ROWS, _round_up(rows, sub))
        total_blocks = -(-rows // tile_rows)
        num_splits = min(_num_tensorcores(), total_blocks)
        steps = -(-total_blocks // num_splits)

        has_tail = (rows % tile_rows) != 0
        has_dup = (num_splits * steps) > total_blocks

        def in_map(p, j):
            # Clamp so the DMA never reads past the array; the kernel skips
            # compute on any duplicated clamped tail block.
            return (jnp.minimum(p * steps + j, total_blocks - 1), 0)

        kernel = functools.partial(
            _dice_partial_kernel,
            valid_rows=rows,
            total_blocks=total_blocks,
            has_tail=has_tail,
            has_dup=has_dup,
        )

        # TODO(synk): on v7x, verify the leading "parallel" axis actually
        # shards across the two TensorCores; if not, move to CORE_PARALLEL.
        partials = pl.pallas_call(
            kernel,
            out_shape=jax.ShapeDtypeStruct((num_splits, 8, LANE), jnp.float32),
            grid_spec=pltpu.PrefetchScalarGridSpec(
                num_scalar_prefetch=0,
                grid=(num_splits, steps),
                in_specs=[
                    pl.BlockSpec((tile_rows, LANE), in_map),
                    pl.BlockSpec((tile_rows, LANE), in_map),
                ],
                out_specs=pl.BlockSpec((1, 8, LANE), lambda p, j: (p, 0, 0)),
                scratch_shapes=[
                    pltpu.VMEM((8, LANE), jnp.float32),
                    pltpu.VMEM((8, LANE), jnp.float32),
                ],
            ),
            compiler_params=pltpu.CompilerParams(
                dimension_semantics=("parallel", "arbitrary"),
                vmem_limit_bytes=VMEM_LIMIT_BYTES,
            ),
        )(x2, t2)

        inter = jnp.sum(partials[:, 0, 0]) + tail_inter
        denom = jnp.sum(partials[:, 1, 0]) + tail_denom

    smooth = jnp.float32(smooth)
    dice = (2.0 * inter + smooth) / (denom + smooth)
    return 1.0 - dice


def dice_loss_ref(inputs, targets, smooth=1.0):
    s = jax.nn.sigmoid(inputs.reshape(-1).astype(jnp.float32))
    t = targets.reshape(-1).astype(jnp.float32)
    inter = jnp.sum(s * t)
    dice = (2.0 * inter + smooth) / (jnp.sum(s) + jnp.sum(t) + smooth)
    return 1.0 - dice


if __name__ == "__main__":
    key = jax.random.PRNGKey(0)
    k1, k2 = jax.random.split(key)
    # NCHW-style logits and binary targets (same shapes as the PyTorch usage).
    x = jax.random.normal(k1, (2, 4, 16, 16), dtype=jnp.float32)
    tgt = (jax.random.uniform(k2, (2, 4, 16, 16)) > 0.5).astype(jnp.float32)

    out = dice_loss(x, tgt, smooth=1.0)
    out = jax.block_until_ready(out)

    ref = dice_loss_ref(x, tgt, smooth=1.0)
    assert jnp.allclose(out, ref, atol=1e-5, rtol=1e-5), (out, ref)
    print("KERNEL_OK")
</pallas_src>

<mosaic_0001>
module attributes {stable_mosaic.version = 11 : i64} {
  func.func @_dice_partial_kernel(%arg0: i32, %arg1: i32, %arg2: memref<16x128xf32, #tpu.memory_space<vmem>>, %arg3: memref<16x128xf32, #tpu.memory_space<vmem>>, %arg4: memref<1x8x128xf32, #tpu.memory_space<vmem>>, %arg5: memref<8x128xf32, #tpu.memory_space<vmem>>, %arg6: memref<8x128xf32, #tpu.memory_space<vmem>>) attributes {dimension_semantics = [#tpu.dimension_semantics<parallel>, #tpu.dimension_semantics<arbitrary>], iteration_bounds = array<i64: 1, 1>, scalar_prefetch = 0 : i64, scratch_operands = 2 : i64, tpu.core_type = #tpu.core_type<tc>, window_params = [{transform_indices = @transform_0, window_bounds = array<i64: 16, 128>}, {transform_indices = @transform_1, window_bounds = array<i64: 16, 128>}, {transform_indices = @transform_2, window_bounds = array<i64: 1, 8, 128>}]} {
    %c0_i32 = arith.constant 0 : i32
    %0 = arith.cmpi eq, %arg1, %c0_i32 : i32
    %1 = arith.extui %0 : i1 to i32
    %c0_i32_0 = arith.constant 0 : i32
    %2 = arith.cmpi ne, %1, %c0_i32_0 : i32
    scf.if %2 {
      %cst_16 = arith.constant 0.000000e+00 : f32
      %25 = vector.broadcast %cst_16 : f32 to vector<8x128xf32>
      %c0_17 = arith.constant 0 : index
      %c0_18 = arith.constant 0 : index
      %26 = vector.load %arg5[%c0_17, %c0_18] : memref<8x128xf32, #tpu.memory_space<vmem>>, vector<8x128xf32>
      tpu.vector_store %arg5[%c0_17, %c0_18], %25 {strides = array<i32>} : memref<8x128xf32, #tpu.memory_space<vmem>>, vector<8x128xf32>,
      %cst_19 = arith.constant 0.000000e+00 : f32
      %27 = vector.broadcast %cst_19 : f32 to vector<8x128xf32>
      %c0_20 = arith.constant 0 : index
      %c0_21 = arith.constant 0 : index
      %28 = vector.load %arg6[%c0_20, %c0_21] : memref<8x128xf32, #tpu.memory_space<vmem>>, vector<8x128xf32>
      tpu.vector_store %arg6[%c0_20, %c0_21], %27 {strides = array<i32>} : memref<8x128xf32, #tpu.memory_space<vmem>>, vector<8x128xf32>,
    } else {
    }
    %c0 = arith.constant 0 : index
    %c0_1 = arith.constant 0 : index
    %3 = vector.load %arg2[%c0, %c0_1] : memref<16x128xf32, #tpu.memory_space<vmem>>, vector<16x128xf32>
    %c0_2 = arith.constant 0 : index
    %c0_3 = arith.constant 0 : index
    %4 = vector.load %arg3[%c0_2, %c0_3] : memref<16x128xf32, #tpu.memory_space<vmem>>, vector<16x128xf32>
    %5 = arith.negf %3 : vector<16x128xf32>
    %6 = math.exp %5 : vector<16x128xf32>
    %cst = arith.constant 1.000000e+00 : f32
    %7 = vector.broadcast %cst : f32 to vector<16x128xf32>
    %8 = arith.addf %7, %6 : vector<16x128xf32>
    %9 = arith.divf %7, %8 : vector<16x128xf32>
    %10 = arith.mulf %9, %4 : vector<16x128xf32>
    %11 = vector.shape_cast %10 : vector<16x128xf32> to vector<2x8x128xf32>
    %12 = arith.addf %9, %4 : vector<16x128xf32>
    %13 = vector.shape_cast %12 : vector<16x128xf32> to vector<2x8x128xf32>
    %c0_4 = arith.constant 0 : index
    %c0_5 = arith.constant 0 : index
    %14 = vector.load %arg5[%c0_4, %c0_5] : memref<8x128xf32, #tpu.memory_space<vmem>>, vector<8x128xf32>
    %cst_6 = arith.constant dense<0.000000e+00> : vector<8x128xf32>
    %15 = vector.multi_reduction <add>, %11, %cst_6 [0] : vector<2x8x128xf32> to vector<8x128xf32>
    %16 = arith.addf %14, %15 : vector<8x128xf32>
    %c0_7 = arith.constant 0 : index
    %c0_8 = arith.constant 0 : index
    %17 = vector.load %arg5[%c0_7, %c0_8] : memref<8x128xf32, #tpu.memory_space<vmem>>, vector<8x128xf32>
    tpu.vector_store %arg5[%c0_7, %c0_8], %16 {strides = array<i32>} : memref<8x128xf32, #tpu.memory_space<vmem>>, vector<8x128xf32>,
    %c0_9 = arith.constant 0 : index
    %c0_10 = arith.constant 0 : index
    %18 = vector.load %arg6[%c0_9, %c0_10] : memref<8x128xf32, #tpu.memory_space<vmem>>, vector<8x128xf32>
    %cst_11 = arith.constant dense<0.000000e+00> : vector<8x128xf32>
    %19 = vector.multi_reduction <add>, %13, %cst_11 [0] : vector<2x8x128xf32> to vector<8x128xf32>
    %20 = arith.addf %18, %19 : vector<8x128xf32>
    %c0_12 = arith.constant 0 : index
    %c0_13 = arith.constant 0 : index
    %21 = vector.load %arg6[%c0_12, %c0_13] : memref<8x128xf32, #tpu.memory_space<vmem>>, vector<8x128xf32>
    tpu.vector_store %arg6[%c0_12, %c0_13], %20 {strides = array<i32>} : memref<8x128xf32, #tpu.memory_space<vmem>>, vector<8x128xf32>,
    %c0_i32_14 = arith.constant 0 : i32
    %22 = arith.cmpi eq, %arg1, %c0_i32_14 : i32
    %23 = arith.extui %22 : i1 to i32
    %c0_i32_15 = arith.constant 0 : i32
    %24 = arith.cmpi ne, %23, %c0_i32_15 : i32
    scf.if %24 {
      %c0_16 = arith.constant 0 : index
      %c0_17 = arith.constant 0 : index
      %25 = vector.load %arg5[%c0_16, %c0_17] : memref<8x128xf32, #tpu.memory_space<vmem>>, vector<8x128xf32>
      %26 = vector.shape_cast %25 : vector<8x128xf32> to vector<1x8x128xf32>
      %cst_18 = arith.constant dense<0.000000e+00> : vector<1xf32>
      %27 = vector.multi_reduction <add>, %26, %cst_18 [1, 2] : vector<1x8x128xf32> to vector<1xf32>
      %28 = vector.shape_cast %27 : vector<1xf32> to vector<1x1x1xf32>
      %29 = vector.extract %28[0, 0, 0] : f32 from vector<1x1x1xf32>
      %c0_19 = arith.constant 0 : index
      %c0_20 = arith.constant 0 : index
      %30 = vector.load %arg6[%c0_19, %c0_20] : memref<8x128xf32, #tpu.memory_space<vmem>>, vector<8x128xf32>
      %31 = vector.shape_cast %30 : vector<8x128xf32> to vector<1x8x128xf32>
      %cst_21 = arith.constant dense<0.000000e+00> : vector<1xf32>
      %32 = vector.multi_reduction <add>, %31, %cst_21 [1, 2] : vector<1x8x128xf32> to vector<1xf32>
      %33 = vector.shape_cast %32 : vector<1xf32> to vector<1x1x1xf32>
      %34 = vector.extract %33[0, 0, 0] : f32 from vector<1x1x1xf32>
      %35 = tpu.iota {dimensions = array<i32: 1>} : vector<1x8x128xi32>
      %c0_i32_22 = arith.constant 0 : i32
      %36 = vector.broadcast %c0_i32_22 : i32 to vector<1x8x128xi32>
      %37 = arith.cmpi eq, %35, %36 : vector<1x8x128xi32>
      %c1_i32 = arith.constant 1 : i32
      %38 = vector.broadcast %c1_i32 : i32 to vector<1x8x128xi32>
      %39 = arith.cmpi eq, %35, %38 : vector<1x8x128xi32>
      %cst_23 = arith.constant 0.000000e+00 : f32
      %40 = vector.broadcast %34 : f32 to vector<1x8x128xf32>
      %41 = vector.broadcast %cst_23 : f32 to vector<1x8x128xf32>
      %42 = arith.select %39, %40, %41 : vector<1x8x128xi1>, vector<1x8x128xf32>
      %43 = vector.broadcast %29 : f32 to vector<1x8x128xf32>
      %44 = arith.select %37, %43, %42 : vector<1x8x128xi1>, vector<1x8x128xf32>
      %c0_24 = arith.constant 0 : index
      %c0_25 = arith.constant 0 : index
      %c0_26 = arith.constant 0 : index
      %45 = vector.load %arg4[%c0_24, %c0_25, %c0_26] : memref<1x8x128xf32, #tpu.memory_space<vmem>>, vector<1x8x128xf32>
      tpu.vector_store %arg4[%c0_24, %c0_25, %c0_26], %44 {strides = array<i32>} : memref<1x8x128xf32, #tpu.memory_space<vmem>>, vector<1x8x128xf32>,
    } else {
    }
    return
  }
  func.func @transform_0(%arg0: i32, %arg1: i32) -> (i32, i32) {
    %c1_i32 = arith.constant 1 : i32
    %0 = arith.muli %arg0, %c1_i32 : i32
    %1 = arith.addi %0, %arg1 : i32
    %c0_i32 = arith.constant 0 : i32
    %2 = arith.minsi %1, %c0_i32 : i32
    %c0_i32_0 = arith.constant 0 : i32
    %c0_i32_1 = arith.constant 0 : i32
    return %2, %c0_i32_0 : i32, i32
  }
  func.func @transform_1(%arg0: i32, %arg1: i32) -> (i32, i32) {
    %c1_i32 = arith.constant 1 : i32
    %0 = arith.muli %arg0, %c1_i32 : i32
    %1 = arith.addi %0, %arg1 : i32
    %c0_i32 = arith.constant 0 : i32
    %2 = arith.minsi %1, %c0_i32 : i32
    %c0_i32_0 = arith.constant 0 : i32
    %c0_i32_1 = arith.constant 0 : i32
    return %2, %c0_i32_0 : i32, i32
  }
  func.func @transform_2(%arg0: i32, %arg1: i32) -> (i32, i32, i32) {
    %c0_i32 = arith.constant 0 : i32
    %c0_i32_0 = arith.constant 0 : i32
    %c0_i32_1 = arith.constant 0 : i32
    return %arg0, %c0_i32, %c0_i32_0 : i32, i32, i32
  }
}

</mosaic_0001>

<llo_original>
// kernel: tpu_custom_call.1
$region0: #{tpu_custom_call.1}
  #allocation0 [shape = 'u32[]', space=smem, size = 0x4, offset = 0x4, fixed_abs, tag = 'smem constant byte address 0x4 - core index']
  #allocation1 [shape = 'u32[144,128]{1,0:T(1,128)}', space=vmem, size = 0x12000, scoped, tag = 'internal scratch']
  #allocation2 [shape = 'f32[8,128]{1,0:T(8,128)}', space=vmem, size = 0x1000, scoped, tag = 'scratch operand']
  #allocation3 [shape = 'f32[8,128]{1,0:T(8,128)}', space=vmem, size = 0x1000, scoped, tag = 'scratch operand']
  %s0 = inlined_call_operand.hbm [shape: f32[16,128], index: 0, kind: input, shape index: {}]
  %s1 = inlined_call_operand.hbm [shape: f32[16,128], index: 1, kind: input, shape index: {}]
  %s2 = inlined_call_operand.hbm [shape: f32[1,8,128], index: 2, kind: output, shape index: {}]
  %s3 = sld [smem:[#allocation0]]
  $region34: #{tpu_custom_call.1} parent=0
    _
  %s5 = ssub.s32 1, %s3
  %s6 = scalar_select 0, %s5, %s3
  $region1: #{tpu_custom_call.1} parent=0
    #allocation4 [shape = 'u8[8192]{0}', space=vmem, size = 0x2000, scoped, tag = 'input window, operand 0, single buffered']
    #allocation5 [shape = 's32[1]{0}', space=sflag, size = 0x4, scoped, tag = 'scoped memory for tpu_custom_call.1']
    #allocation6 [shape = 's32[1]{0}', space=sflag, size = 0x4, scoped, tag = 'scoped memory for tpu_custom_call.1']
    #allocation7 [shape = 'u8[8192]{0}', space=vmem, size = 0x2000, scoped, tag = 'input window, operand 1, single buffered']
    #allocation8 [shape = 's32[1]{0}', space=sflag, size = 0x4, scoped, tag = 'scoped memory for tpu_custom_call.1']
    #allocation9 [shape = 'u8[4096]{0}', space=vmem, size = 0x1000, scoped, tag = 'output window, operand 0, single buffered']
    %7 = vsyncpa [#allocation5], 0
    %8 = vsyncpa [#allocation8], 0
    %9 = vsyncpa [#allocation6], 0
    // Predicated region
    $region2: #{tpu_custom_call.1} parent=1 // pred_check
      _
    $region3: #{tpu_custom_call.1} parent=1 // pred_check_branch
      %11 = sbr.rel (0) target = $region5
    $region4: #{tpu_custom_call.1} parent=1 // pred_region
      %s12 = sadd.s32 0, 0
      %p13 = scmp.lt.s32.totalorder %s12, 0
      %s14 = scalar_select %p13, %s12, 0
      %s15 = smul.u32 2, %s14
      %s17 = ssub.s32 256, 256
      %18 = vsyncadd [#allocation5], %s17
      %s19 = smul.addr %s15, 128
      %s20 = scalar_lea.hbm %s0, %s19
      %s21 = sshll.u32 [#allocation4], 4
      %s22 = int_to_ptr.vmem [resolvable:$true] %s21
      %27 = dma.hbm_to_vmem [thread:$0]  %s20, 256, %s22, [#allocation5], 128, 128, 8
    $region5: #{tpu_custom_call.1} parent=1 // pred_fallthru
      _
    // Predicated region
    $region6: #{tpu_custom_call.1} parent=1 // pred_check
      _
    $region7: #{tpu_custom_call.1} parent=1 // pred_check_branch
      %29 = sbr.rel (0) target = $region9
    $region8: #{tpu_custom_call.1} parent=1 // pred_region
      %s30 = sadd.s32 0, 0
      %p31 = scmp.lt.s32.totalorder %s30, 0
      %s32 = scalar_select %p31, %s30, 0
      %s33 = smul.u32 2, %s32
      %s35 = ssub.s32 256, 256
      %36 = vsyncadd [#allocation8], %s35
      %s37 = smul.addr %s33, 128
      %s38 = scalar_lea.hbm %s1, %s37
      %s39 = sshll.u32 [#allocation7], 4
      %s40 = int_to_ptr.vmem [resolvable:$true] %s39
      %45 = dma.hbm_to_vmem [thread:$0]  %s38, 256, %s40, [#allocation8], 128, 128, 8
    $region9: #{tpu_custom_call.1} parent=1 // pred_fallthru
      _
    // Predicated region
    $region10: #{tpu_custom_call.1} parent=1 // pred_check
      _
    $region11: #{tpu_custom_call.1} parent=1 // pred_check_branch
      %47 = sbr.rel (0) target = $region13
    $region12: #{tpu_custom_call.1} parent=1 // pred_region
      %48 = dma.done [#allocation5], 256
    $region13: #{tpu_custom_call.1} parent=1 // pred_fallthru
      _
    // Predicated region
    $region14: #{tpu_custom_call.1} parent=1 // pred_check
      _
    $region15: #{tpu_custom_call.1} parent=1 // pred_check_branch
      %50 = sbr.rel (0) target = $region17
    $region16: #{tpu_custom_call.1} parent=1 // pred_region
      %51 = dma.done [#allocation8], 256
    $region17: #{tpu_custom_call.1} parent=1 // pred_fallthru
      _
    %s52 = sadd.s32 0, 0
    %p53 = scmp.lt.s32.totalorder %s52, 0
    %s54 = scalar_select %p53, %s52, 0
    %s55 = smul.u32 2, %s54
    %s56 = sadd.s32 0, 0
    %p57 = scmp.lt.s32.totalorder %s56, 0
    %s58 = scalar_select %p57, %s56, 0
    %s59 = smul.u32 2, %s58
    %p60 = scmp.eq.s32.totalorder 0, 0
    // Predicated region
    $region18: #{tpu_custom_call.1} parent=1 // pred_check
      %p61 = pneg %p60
    $region19: #{tpu_custom_call.1} parent=1 // pred_check_branch
      %63 = sbr.rel (%p61) target = $region21
    $region20: #{tpu_custom_call.1} parent=1 // pred_region
      %64 = vst [vmem:[#allocation2] sm:$0xff] 0.0
      %65 = vst [vmem:[#allocation3] sm:$0xff] 0.0
    $region21: #{tpu_custom_call.1} parent=1 // pred_fallthru
      _
    %v66 = vld [vmem:[#allocation4] sm:$0xff]
    %v67 = vld [vmem:[#allocation4 + $0x8] sm:$0xff]
    %v68 = vld [vmem:[#allocation7] sm:$0xff]
    %v69 = vld [vmem:[#allocation7 + $0x8] sm:$0xff]
    %v70 = vxor.u32 %v66, 2147483648
    %v71 = vxor.u32 %v67, 2147483648
    %v72 = vmul.f32 %v70, 1.442695
    %v73 = vpow.pop %v72
    %v74 = vmul.f32 %v71, 1.442695
    %v75 = vpow.pop %v74
    %v76 = vadd.f32 %v73, 1.0
    %v77 = vadd.f32 %v75, 1.0
    %v78 = vrcp.pop %v76
    %v79 = vmul.f32 1.0, %v78
    %v80 = vrcp.pop %v77
    %v81 = vmul.f32 1.0, %v80
    %v82 = vmul.f32 %v79, %v68
    %v83 = vmul.f32 %v81, %v69
    %v84 = vadd.f32 %v79, %v68
    %v85 = vadd.f32 %v81, %v69
    %v86 = vld [vmem:[#allocation2] sm:$0xff]
    %v87 = vadd.f32 %v82, %v83
    %v88 = vadd.f32 %v86, %v87
    %89 = vst [vmem:[#allocation2] sm:$0xff] %v88
    %v90 = vld [vmem:[#allocation3] sm:$0xff]
    %v91 = vadd.f32 %v84, %v85
    %v92 = vadd.f32 %v90, %v91
    %93 = vst [vmem:[#allocation3] sm:$0xff] %v92
    // Predicated region
    $region22: #{tpu_custom_call.1} parent=1 // pred_check
      %p94 = pneg %p60
    $region23: #{tpu_custom_call.1} parent=1 // pred_check_branch
      %96 = sbr.rel (%p94) target = $region25
    $region24: #{tpu_custom_call.1} parent=1 // pred_region
      %v97 = vld [vmem:[#allocation2] sm:$0xff]
      %98 = vadd.xlane.f32.xlu0 %v97
      %v99 = vpop.xlane.xlu0 %98
      %v100 = vrot.slane %v99, 4
      %v101 = vadd.f32 %v99, %v100
      %v102 = vrot.slane %v101, 2
      %v103 = vadd.f32 %v101, %v102
      %v104 = vrot.slane %v103, 1
      %v105 = vadd.f32 %v103, %v104
      %s106 = vtos %v105
      %v107 = vld [vmem:[#allocation3] sm:$0xff]
      %108 = vadd.xlane.f32.xlu0 %v107
      %v109 = vpop.xlane.xlu0 %108
      %v110 = vrot.slane %v109, 4
      %v111 = vadd.f32 %v109, %v110
      %v112 = vrot.slane %v111, 2
      %v113 = vadd.f32 %v111, %v112
      %v114 = vrot.slane %v113, 1
      %v115 = vadd.f32 %v113, %v114
      %s116 = vtos %v115
      %v117 = vlaneseq
      %v118 = vshrl.u32 %v117, 7
      %vm119 = vcmp.eq.s32.totalorder %v118, 0
      %vm120 = vcmp.eq.s32.totalorder %v118, 1
      %v121 = vstv %s116
      %v122 = vsel %vm120, %v121, 0.0
      %v123 = vstv %s106
      %v124 = vsel %vm119, %v123, %v122
      %125 = vst [vmem:[#allocation9] sm:$0xff] %v124
    $region25: #{tpu_custom_call.1} parent=1 // pred_fallthru
      _
    // Predicated region
    $region26: #{tpu_custom_call.1} parent=1 // pred_check
      _
    $region27: #{tpu_custom_call.1} parent=1 // pred_check_branch
      %127 = sbr.rel (0) target = $region29
    $region28: #{tpu_custom_call.1} parent=1 // pred_region
      %s129 = ssub.s32 128, 128
      %130 = vsyncadd [#allocation6], %s129
      %s132 = sshll.u32 [#allocation9], 4
      %s133 = int_to_ptr.vmem [resolvable:$true] %s132
      %135 = dma.vmem_to_hbm [thread:$0]  %s133, 128, %s2, [#allocation6]
    $region29: #{tpu_custom_call.1} parent=1 // pred_fallthru
      _
    // Predicated region
    $region30: #{tpu_custom_call.1} parent=1 // pred_check
      _
    $region31: #{tpu_custom_call.1} parent=1 // pred_check_branch
      %137 = sbr.rel (0) target = $region33
    $region32: #{tpu_custom_call.1} parent=1 // pred_region
      %138 = dma.done [#allocation6], 128
    $region33: #{tpu_custom_call.1} parent=1 // pred_fallthru
      _
    %139 = vsyncpa [#allocation5], 1
    %140 = vsyncpa [#allocation8], 1
    %141 = vsyncpa [#allocation6], 1

</llo_original>
